<compile_context>
chip_gen: v7x
topology: tpu7x:2x2x1
jax: 0.10.0
libtpu: 0.0.40
codegen_flags: <defaults>
</compile_context>

<pallas_src>
import jax
import jax.numpy as jnp
import numpy as np
from jax import lax
from jax.experimental import pallas as pl
from jax.experimental.pallas import tpu as pltpu

_EPS = 1e-5


def _silu(v):
    # SiLU.  jax.nn.sigmoid lowers through the EUP transcendental path; if a
    # bundle dump ever shows a VALU divide here, switch to
    #   v * pl.reciprocal(1.0 + jnp.exp(-v), approx=True)
    return v * jax.nn.sigmoid(v)


def _pick_batch_block(batch, cin, cout, hw, dtype_bytes=4, target_block_bytes=2 << 20):
    """Images per grid step.

    Target ~2 MiB of activation traffic per step (measured tile sweeps need
    ~1 MiB+ blocks to reach ~85% of HBM roofline, and per-step overhead is
    ~0.35us), while keeping >= 2 grid steps so v7x's two TensorCores can split
    the 'parallel' batch axis.  VMEM is never the constraint at these sizes."""
    if batch <= 1:
        return 1
    per_img = (cin + cout) * hw * dtype_bytes
    cap = int(max(1, min(batch // 2, target_block_bytes // per_img)))
    for bb in range(cap, 0, -1):
        if batch % bb == 0:
            return bb
    return 1


# ----------------------------- Pallas kernel --------------------------------
def _make_kernel(bb, c2, co2, W, HW):
    cin = 2 * c2

    def kernel(x_ref, dw_ref, pw1_ref, pw2a_ref, pw2b_ref, o_ref):
        # Loop-invariant bias slabs: load once per grid step, not per image.
        # (Per-tap weight slabs are each used exactly once per image, so they
        # are loaded inside the loop -- hoisting them would just cause spills.)
        dw_bias = dw_ref[9]          # (cin, HW)
        pw1_bias = pw1_ref[c2]       # (c2,  HW)
        pw2a_bias = pw2a_ref[c2]     # (co2, HW)
        pw2b_bias = pw2b_ref[c2]     # (co2, HW)

        def image_body(b):
            xi = x_ref[b]                                   # (cin, HW) lane-dense
            x1 = xi[:c2, :]                                 # branch1 input
            x2 = xi[c2:, :]                                 # branch2 input

            # ---- branch2 first 1x1 conv + BN + SiLU (only c2 rows, no zero
            #      weights, SiLU on half the rows of the old version) ----
            acc = pw1_bias
            for ci in range(c2):
                acc = acc + pw1_ref[ci] * x2[ci:ci + 1, :]
            y2 = _silu(acc)                                 # (c2, HW)

            # ---- both branches' depthwise 3x3 + BN in ONE 9-tap pass of lane
            #      rolls on the XLU (boundary masks folded into dw_ref taps) ----
            u = jnp.concatenate([x1, y2], axis=0)           # (cin, HW)
            v = dw_bias
            for k in range(9):
                dy, dx = k // 3 - 1, k % 3 - 1
                s = dy * W + dx                             # neighbor lane offset
                shifted = u if s == 0 else pltpu.roll(u, shift=(-s) % HW, axis=1)
                v = v + dw_ref[k] * shifted

            # ---- final 1x1 convs (+BN+SiLU), split per branch so the old
            #      block-diagonal zero-weight FMAs disappear ----
            v1 = v[:c2, :]
            v2 = v[c2:, :]
            a1 = pw2a_bias
            a2 = pw2b_bias
            for ci in range(c2):
                a1 = a1 + pw2a_ref[ci] * v1[ci:ci + 1, :]
                a2 = a2 + pw2b_ref[ci] * v2[ci:ci + 1, :]
            s1 = _silu(a1)                                  # -> even out channels
            s2 = _silu(a2)                                  # -> odd  out channels

            # ---- ChannelShuffle(2): interleave branch rows, one dense store ----
            rows = []
            for c in range(co2):
                rows.append(s1[c:c + 1, :])
                rows.append(s2[c:c + 1, :])
            o_ref[b] = jnp.concatenate(rows, axis=0)        # (cout, HW)

        if bb <= 4:
            for b in range(bb):           # tiny blocks: cheap static unroll
                image_body(b)
        else:
            pl.loop(0, bb)(image_body)    # big blocks: bounded live ranges

    return kernel


# ------------------------------- wrapper -------------------------------------
def residual_bottleneck(x_nchw, tables, *, batch_block=None):
    """x_nchw: (B, Cin, H, W) float32.  tables: packed tables from build_tables."""
    B, Cin, H, W = x_nchw.shape
    HW = H * W
    c2 = Cin // 2
    co2 = tables["pw2a_tbl"].shape[1]
    Co = 2 * co2
    assert tables["dw_tbl"].shape[1] == Cin
    assert HW % 128 == 0, "lane-dense layout assumes H*W is a multiple of 128"

    bb = _pick_batch_block(B, Cin, Co, HW) if batch_block is None else batch_block
    assert B % bb == 0
    grid = (B // bb,)

    x = x_nchw.reshape(B, Cin, HW)              # free reshape to lane-dense layout
    kernel = _make_kernel(bb, c2, co2, W, HW)

    # Explicit scoped-VMEM budget: double-buffered activation blocks + tables +
    # headroom.  v5e's default scoped limit is 16 MiB, so be explicit; cap well
    # under v7x's 64 MiB physical VMEM.
    blk_bytes = bb * (Cin + Co) * HW * 4
    tbl_bytes = sum(int(np.prod(tables[k].shape)) * 4
                    for k in ("dw_tbl", "pw1_tbl", "pw2a_tbl", "pw2b_tbl"))
    vmem_limit = int(min(48 << 20,
                         max(32 << 20, 2 * blk_bytes + 2 * tbl_bytes + (4 << 20))))

    out = pl.pallas_call(
        kernel,
        out_shape=jax.ShapeDtypeStruct((B, Co, HW), jnp.float32),
        grid=grid,
        in_specs=[
            pl.BlockSpec((bb, Cin, HW), lambda i: (i, 0, 0)),
            # parameter tables: whole array, grid-invariant (fetched once)
            pl.BlockSpec(tables["dw_tbl"].shape, lambda i: (0, 0, 0)),
            pl.BlockSpec(tables["pw1_tbl"].shape, lambda i: (0, 0, 0)),
            pl.BlockSpec(tables["pw2a_tbl"].shape, lambda i: (0, 0, 0)),
            pl.BlockSpec(tables["pw2b_tbl"].shape, lambda i: (0, 0, 0)),
        ],
        out_specs=pl.BlockSpec((bb, Co, HW), lambda i: (i, 0, 0)),
        compiler_params=pltpu.CompilerParams(
            dimension_semantics=("parallel",),
            vmem_limit_bytes=vmem_limit),
    )(x, tables["dw_tbl"], tables["pw1_tbl"], tables["pw2a_tbl"], tables["pw2b_tbl"])

    return out.reshape(B, Co, H, W)             # free reshape back to NCHW


# -------------------------- parameter construction ---------------------------
def make_params(key, in_channels, out_channels):
    c2 = in_channels // 2
    co2 = out_channels // 2
    ks = list(jax.random.split(key, 32))
    it = iter(ks)

    def nrm(shape, scale=0.1):
        return scale * jax.random.normal(next(it), shape, dtype=jnp.float32)

    def bn(c):
        gamma = 1.0 + 0.1 * jax.random.normal(next(it), (c,), dtype=jnp.float32)
        beta = 0.1 * jax.random.normal(next(it), (c,), dtype=jnp.float32)
        mean = 0.1 * jax.random.normal(next(it), (c,), dtype=jnp.float32)
        var = jnp.abs(jax.random.normal(next(it), (c,), dtype=jnp.float32)) + 0.5
        return (gamma, beta, mean, var)

    return dict(
        # branch1: Conv2d(c2,c2,3,pad=1,groups=c2) + BN + ConvBnSilu(c2,co2,1)
        b1_dw_w=nrm((3, 3, c2)), b1_dw_b=nrm((c2,)), b1_bn1=bn(c2),
        b1_pw_w=nrm((c2, co2)), b1_pw_b=nrm((co2,)), b1_bn2=bn(co2),
        # branch2: ConvBnSilu(c2,c2,1) + dwConv3x3 + BN + ConvBnSilu(c2,co2,1)
        b2_pw1_w=nrm((c2, c2)), b2_pw1_b=nrm((c2,)), b2_bn1=bn(c2),
        b2_dw_w=nrm((3, 3, c2)), b2_dw_b=nrm((c2,)), b2_bn2=bn(c2),
        b2_pw2_w=nrm((c2, co2)), b2_pw2_b=nrm((co2,)), b2_bn3=bn(co2),
    )


def build_tables(p, H, W, eps=_EPS):
    """Fold eval-mode BatchNorm into conv weights and pack everything into four
    lane-dense (.., C, H*W) float32 tables:
      dw_tbl  : (10, Cin, HW)    9 boundary-masked depthwise taps + bias (both branches)
      pw1_tbl : (c2+1, c2, HW)   branch2 first 1x1 weights + bias (branch2 rows only)
      pw2a_tbl: (c2+1, co2, HW)  branch1 final 1x1 weights + bias (-> even shuffled rows)
      pw2b_tbl: (c2+1, co2, HW)  branch2 final 1x1 weights + bias (-> odd shuffled rows)
    """
    HW = H * W

    def fold(w, b, bnp):
        gamma, beta, mean, var = bnp
        s = gamma / jnp.sqrt(var + eps)              # per out-channel (last axis of w)
        return w * s, (b - mean) * s + beta

    b1_dw_w, b1_dw_b = fold(p["b1_dw_w"], p["b1_dw_b"], p["b1_bn1"])
    b1_pw_w, b1_pw_b = fold(p["b1_pw_w"], p["b1_pw_b"], p["b1_bn2"])
    b2_pw1_w, b2_pw1_b = fold(p["b2_pw1_w"], p["b2_pw1_b"], p["b2_bn1"])
    b2_dw_w, b2_dw_b = fold(p["b2_dw_w"], p["b2_dw_b"], p["b2_bn2"])
    b2_pw2_w, b2_pw2_b = fold(p["b2_pw2_w"], p["b2_pw2_b"], p["b2_bn3"])

    c2 = b1_dw_b.shape[0]
    cin = 2 * c2

    # zero-padding boundary masks per 3x3 tap, in flattened (h*W + w) lane order
    hh = np.arange(HW) // W
    ww = np.arange(HW) % W
    masks = np.stack([((hh + kh - 1 >= 0) & (hh + kh - 1 < H) &
                       (ww + kw - 1 >= 0) & (ww + kw - 1 < W)).astype(np.float32)
                      for kh in range(3) for kw in range(3)])          # (9, HW)
    masks = jnp.asarray(masks)

    # combined depthwise table: rows [branch1 | branch2] channels
    dw_w = jnp.concatenate([b1_dw_w.reshape(9, c2).T,
                            b2_dw_w.reshape(9, c2).T], axis=0)         # (cin, 9)
    dw_b = jnp.concatenate([b1_dw_b, b2_dw_b])                         # (cin,)
    dw_tbl = jnp.concatenate(
        [dw_w.T[:, :, None] * masks[:, None, :],                       # (9, cin, HW)
         jnp.broadcast_to(dw_b[None, :, None], (1, cin, HW))], axis=0)

    def pack_pw(w, b):
        """(n_in, n_out) weights + (n_out,) bias -> (n_in+1, n_out, HW) slabs."""
        n_in, n_out = w.shape
        return jnp.concatenate(
            [jnp.broadcast_to(w[:, :, None], (n_in, n_out, HW)),
             jnp.broadcast_to(b[None, :, None], (1, n_out, HW))], axis=0)

    pw1_tbl = pack_pw(b2_pw1_w, b2_pw1_b)    # branch2 first 1x1
    pw2a_tbl = pack_pw(b1_pw_w, b1_pw_b)     # branch1 final 1x1 -> even channels
    pw2b_tbl = pack_pw(b2_pw2_w, b2_pw2_b)   # branch2 final 1x1 -> odd channels

    return dict(dw_tbl=dw_tbl, pw1_tbl=pw1_tbl, pw2a_tbl=pw2a_tbl, pw2b_tbl=pw2b_tbl)


# ---------------------------- pure-JAX reference ------------------------------
def reference_forward(x_nchw, p, eps=_EPS):
    x = jnp.transpose(x_nchw, (0, 2, 3, 1))   # NHWC
    c2 = x.shape[-1] // 2
    x1, x2 = x[..., :c2], x[..., c2:]
    dn = ("NHWC", "HWIO", "NHWC")

    def bn(v, bnp):
        gamma, beta, mean, var = bnp
        return (v - mean) / jnp.sqrt(var + eps) * gamma + beta

    def dw(v, w, b):
        wf = w[:, :, None, :]                 # (3,3,1,C) depthwise
        y = lax.conv_general_dilated(v, wf, (1, 1), "SAME", dimension_numbers=dn,
                                     feature_group_count=v.shape[-1],
                                     precision=lax.Precision.HIGHEST)
        return y + b

    def pw(v, w, b):
        wf = w[None, None, :, :]              # (1,1,Cin,Cout)
        y = lax.conv_general_dilated(v, wf, (1, 1), "VALID", dimension_numbers=dn,
                                     precision=lax.Precision.HIGHEST)
        return y + b

    silu = lambda v: v * jax.nn.sigmoid(v)

    y1 = bn(dw(x1, p["b1_dw_w"], p["b1_dw_b"]), p["b1_bn1"])
    y1 = silu(bn(pw(y1, p["b1_pw_w"], p["b1_pw_b"]), p["b1_bn2"]))

    y2 = silu(bn(pw(x2, p["b2_pw1_w"], p["b2_pw1_b"]), p["b2_bn1"]))
    y2 = bn(dw(y2, p["b2_dw_w"], p["b2_dw_b"]), p["b2_bn2"])
    y2 = silu(bn(pw(y2, p["b2_pw2_w"], p["b2_pw2_b"]), p["b2_bn3"]))

    out = jnp.concatenate([y1, y2], axis=-1)
    B, H, W, Co = out.shape
    out = out.reshape(B, H, W, 2, Co // 2).transpose(0, 1, 2, 4, 3).reshape(B, H, W, Co)
    return jnp.transpose(out, (0, 3, 1, 2))   # back to NCHW


# ----------------------------------- main -------------------------------------
if __name__ == "__main__":
    B, Cin, Cout, H, W = 2, 8, 8, 16, 16
    key = jax.random.PRNGKey(0)
    kx, kp = jax.random.split(key)

    x_nchw = jax.random.normal(kx, (B, Cin, H, W), dtype=jnp.float32)
    raw_params = make_params(kp, Cin, Cout)
    tables = build_tables(raw_params, H, W)

    out_nchw = residual_bottleneck(x_nchw, tables)
    jax.block_until_ready(out_nchw)
    assert out_nchw.shape == (B, Cout, H, W)

    ref_nchw = reference_forward(x_nchw, raw_params)
    np.testing.assert_allclose(np.asarray(out_nchw), np.asarray(ref_nchw),
                               rtol=1e-3, atol=1e-3)

    # Also exercise the large-batch path (pl.loop over images inside a block).
    B2 = 16
    x2_nchw = jax.random.normal(jax.random.PRNGKey(1), (B2, Cin, H, W),
                                dtype=jnp.float32)
    out2 = residual_bottleneck(x2_nchw, tables)
    jax.block_until_ready(out2)
    ref2 = reference_forward(x2_nchw, raw_params)
    np.testing.assert_allclose(np.asarray(out2), np.asarray(ref2),
                               rtol=1e-3, atol=1e-3)

    print("KERNEL_OK")
</pallas_src>

<mosaic_0001>
module attributes {stable_mosaic.version = 11 : i64} {
  func.func @kernel(%arg0: i32, %arg1: memref<1x8x256xf32, #tpu.memory_space<vmem>>, %arg2: memref<10x8x256xf32, #tpu.memory_space<vmem>>, %arg3: memref<5x4x256xf32, #tpu.memory_space<vmem>>, %arg4: memref<5x4x256xf32, #tpu.memory_space<vmem>>, %arg5: memref<5x4x256xf32, #tpu.memory_space<vmem>>, %arg6: memref<1x8x256xf32, #tpu.memory_space<vmem>>) attributes {dimension_semantics = [#tpu.dimension_semantics<parallel>], iteration_bounds = array<i64: 2>, scalar_prefetch = 0 : i64, scratch_operands = 0 : i64, tpu.core_type = #tpu.core_type<tc>, window_params = [{transform_indices = @transform_0, window_bounds = array<i64: 1, 8, 256>}, {pipeline_mode = #tpu.pipeline_mode<synchronous>, transform_indices = @transform_1, window_bounds = array<i64: 10, 8, 256>}, {pipeline_mode = #tpu.pipeline_mode<synchronous>, transform_indices = @transform_2, window_bounds = array<i64: 5, 4, 256>}, {pipeline_mode = #tpu.pipeline_mode<synchronous>, transform_indices = @transform_3, window_bounds = array<i64: 5, 4, 256>}, {pipeline_mode = #tpu.pipeline_mode<synchronous>, transform_indices = @transform_4, window_bounds = array<i64: 5, 4, 256>}, {transform_indices = @transform_5, window_bounds = array<i64: 1, 8, 256>}]} {
    %c9 = arith.constant 9 : index
    %c0 = arith.constant 0 : index
    %c0_0 = arith.constant 0 : index
    %0 = vector.load %arg2[%c9, %c0, %c0_0] : memref<10x8x256xf32, #tpu.memory_space<vmem>>, vector<1x8x256xf32>
    %1 = vector.shape_cast %0 : vector<1x8x256xf32> to vector<8x256xf32>
    %c4 = arith.constant 4 : index
    %c0_1 = arith.constant 0 : index
    %c0_2 = arith.constant 0 : index
    %2 = vector.load %arg3[%c4, %c0_1, %c0_2] : memref<5x4x256xf32, #tpu.memory_space<vmem>>, vector<1x4x256xf32>
    %3 = vector.shape_cast %2 : vector<1x4x256xf32> to vector<4x256xf32>
    %c4_3 = arith.constant 4 : index
    %c0_4 = arith.constant 0 : index
    %c0_5 = arith.constant 0 : index
    %4 = vector.load %arg4[%c4_3, %c0_4, %c0_5] : memref<5x4x256xf32, #tpu.memory_space<vmem>>, vector<1x4x256xf32>
    %5 = vector.shape_cast %4 : vector<1x4x256xf32> to vector<4x256xf32>
    %c4_6 = arith.constant 4 : index
    %c0_7 = arith.constant 0 : index
    %c0_8 = arith.constant 0 : index
    %6 = vector.load %arg5[%c4_6, %c0_7, %c0_8] : memref<5x4x256xf32, #tpu.memory_space<vmem>>, vector<1x4x256xf32>
    %7 = vector.shape_cast %6 : vector<1x4x256xf32> to vector<4x256xf32>
    %c0_9 = arith.constant 0 : index
    %c0_10 = arith.constant 0 : index
    %c0_11 = arith.constant 0 : index
    %8 = vector.load %arg1[%c0_9, %c0_10, %c0_11] : memref<1x8x256xf32, #tpu.memory_space<vmem>>, vector<1x8x256xf32>
    %9 = vector.shape_cast %8 : vector<1x8x256xf32> to vector<8x256xf32>
    %10 = vector.extract_strided_slice %9 {offsets = [0, 0], sizes = [4, 256], strides = [1, 1]} : vector<8x256xf32> to vector<4x256xf32>
    %11 = vector.extract_strided_slice %9 {offsets = [4, 0], sizes = [4, 256], strides = [1, 1]} : vector<8x256xf32> to vector<4x256xf32>
    %c0_12 = arith.constant 0 : index
    %c0_13 = arith.constant 0 : index
    %c0_14 = arith.constant 0 : index
    %12 = vector.load %arg3[%c0_12, %c0_13, %c0_14] : memref<5x4x256xf32, #tpu.memory_space<vmem>>, vector<1x4x256xf32>
    %13 = vector.shape_cast %12 : vector<1x4x256xf32> to vector<4x256xf32>
    %14 = vector.extract_strided_slice %11 {offsets = [0, 0], sizes = [1, 256], strides = [1, 1]} : vector<4x256xf32> to vector<1x256xf32>
    %15 = vector.broadcast %14 : vector<1x256xf32> to vector<4x256xf32>
    %16 = arith.mulf %13, %15 : vector<4x256xf32>
    %17 = arith.addf %3, %16 : vector<4x256xf32>
    %c1 = arith.constant 1 : index
    %c0_15 = arith.constant 0 : index
    %c0_16 = arith.constant 0 : index
    %18 = vector.load %arg3[%c1, %c0_15, %c0_16] : memref<5x4x256xf32, #tpu.memory_space<vmem>>, vector<1x4x256xf32>
    %19 = vector.shape_cast %18 : vector<1x4x256xf32> to vector<4x256xf32>
    %20 = vector.extract_strided_slice %11 {offsets = [1, 0], sizes = [1, 256], strides = [1, 1]} : vector<4x256xf32> to vector<1x256xf32>
    %21 = vector.broadcast %20 : vector<1x256xf32> to vector<4x256xf32>
    %22 = arith.mulf %19, %21 : vector<4x256xf32>
    %23 = arith.addf %17, %22 : vector<4x256xf32>
    %c2 = arith.constant 2 : index
    %c0_17 = arith.constant 0 : index
    %c0_18 = arith.constant 0 : index
    %24 = vector.load %arg3[%c2, %c0_17, %c0_18] : memref<5x4x256xf32, #tpu.memory_space<vmem>>, vector<1x4x256xf32>
    %25 = vector.shape_cast %24 : vector<1x4x256xf32> to vector<4x256xf32>
    %26 = vector.extract_strided_slice %11 {offsets = [2, 0], sizes = [1, 256], strides = [1, 1]} : vector<4x256xf32> to vector<1x256xf32>
    %27 = vector.broadcast %26 : vector<1x256xf32> to vector<4x256xf32>
    %28 = arith.mulf %25, %27 : vector<4x256xf32>
    %29 = arith.addf %23, %28 : vector<4x256xf32>
    %c3 = arith.constant 3 : index
    %c0_19 = arith.constant 0 : index
    %c0_20 = arith.constant 0 : index
    %30 = vector.load %arg3[%c3, %c0_19, %c0_20] : memref<5x4x256xf32, #tpu.memory_space<vmem>>, vector<1x4x256xf32>
    %31 = vector.shape_cast %30 : vector<1x4x256xf32> to vector<4x256xf32>
    %32 = vector.extract_strided_slice %11 {offsets = [3, 0], sizes = [1, 256], strides = [1, 1]} : vector<4x256xf32> to vector<1x256xf32>
    %33 = vector.broadcast %32 : vector<1x256xf32> to vector<4x256xf32>
    %34 = arith.mulf %31, %33 : vector<4x256xf32>
    %35 = arith.addf %29, %34 : vector<4x256xf32>
    %36 = arith.negf %35 : vector<4x256xf32>
    %37 = math.exp %36 : vector<4x256xf32>
    %cst = arith.constant 1.000000e+00 : f32
    %38 = vector.broadcast %cst : f32 to vector<4x256xf32>
    %39 = arith.addf %38, %37 : vector<4x256xf32>
    %40 = arith.divf %38, %39 : vector<4x256xf32>
    %41 = arith.mulf %35, %40 : vector<4x256xf32>
    %42 = tpu.concatenate %10, %41 in 0 : vector<4x256xf32>, vector<4x256xf32> -> vector<8x256xf32>
    %c17_i32 = arith.constant 17 : i32
    %43 = tpu.dynamic_rotate %42 by %c17_i32 dim 1 : vector<8x256xf32>, i32 -> vector<8x256xf32>
    %c0_21 = arith.constant 0 : index
    %c0_22 = arith.constant 0 : index
    %c0_23 = arith.constant 0 : index
    %44 = vector.load %arg2[%c0_21, %c0_22, %c0_23] : memref<10x8x256xf32, #tpu.memory_space<vmem>>, vector<1x8x256xf32>
    %45 = vector.shape_cast %44 : vector<1x8x256xf32> to vector<8x256xf32>
    %46 = arith.mulf %45, %43 : vector<8x256xf32>
    %47 = arith.addf %1, %46 : vector<8x256xf32>
    %c16_i32 = arith.constant 16 : i32
    %48 = tpu.dynamic_rotate %42 by %c16_i32 dim 1 : vector<8x256xf32>, i32 -> vector<8x256xf32>
    %c1_24 = arith.constant 1 : index
    %c0_25 = arith.constant 0 : index
    %c0_26 = arith.constant 0 : index
    %49 = vector.load %arg2[%c1_24, %c0_25, %c0_26] : memref<10x8x256xf32, #tpu.memory_space<vmem>>, vector<1x8x256xf32>
    %50 = vector.shape_cast %49 : vector<1x8x256xf32> to vector<8x256xf32>
    %51 = arith.mulf %50, %48 : vector<8x256xf32>
    %52 = arith.addf %47, %51 : vector<8x256xf32>
    %c15_i32 = arith.constant 15 : i32
    %53 = tpu.dynamic_rotate %42 by %c15_i32 dim 1 : vector<8x256xf32>, i32 -> vector<8x256xf32>
    %c2_27 = arith.constant 2 : index
    %c0_28 = arith.constant 0 : index
    %c0_29 = arith.constant 0 : index
    %54 = vector.load %arg2[%c2_27, %c0_28, %c0_29] : memref<10x8x256xf32, #tpu.memory_space<vmem>>, vector<1x8x256xf32>
    %55 = vector.shape_cast %54 : vector<1x8x256xf32> to vector<8x256xf32>
    %56 = arith.mulf %55, %53 : vector<8x256xf32>
    %57 = arith.addf %52, %56 : vector<8x256xf32>
    %c1_i32 = arith.constant 1 : i32
    %58 = tpu.dynamic_rotate %42 by %c1_i32 dim 1 : vector<8x256xf32>, i32 -> vector<8x256xf32>
    %c3_30 = arith.constant 3 : index
    %c0_31 = arith.constant 0 : index
    %c0_32 = arith.constant 0 : index
    %59 = vector.load %arg2[%c3_30, %c0_31, %c0_32] : memref<10x8x256xf32, #tpu.memory_space<vmem>>, vector<1x8x256xf32>
    %60 = vector.shape_cast %59 : vector<1x8x256xf32> to vector<8x256xf32>
    %61 = arith.mulf %60, %58 : vector<8x256xf32>
    %62 = arith.addf %57, %61 : vector<8x256xf32>
    %c4_33 = arith.constant 4 : index
    %c0_34 = arith.constant 0 : index
    %c0_35 = arith.constant 0 : index
    %63 = vector.load %arg2[%c4_33, %c0_34, %c0_35] : memref<10x8x256xf32, #tpu.memory_space<vmem>>, vector<1x8x256xf32>
    %64 = vector.shape_cast %63 : vector<1x8x256xf32> to vector<8x256xf32>
    %65 = arith.mulf %64, %42 : vector<8x256xf32>
    %66 = arith.addf %62, %65 : vector<8x256xf32>
    %c255_i32 = arith.constant 255 : i32
    %67 = tpu.dynamic_rotate %42 by %c255_i32 dim 1 : vector<8x256xf32>, i32 -> vector<8x256xf32>
    %c5 = arith.constant 5 : index
    %c0_36 = arith.constant 0 : index
    %c0_37 = arith.constant 0 : index
    %68 = vector.load %arg2[%c5, %c0_36, %c0_37] : memref<10x8x256xf32, #tpu.memory_space<vmem>>, vector<1x8x256xf32>
    %69 = vector.shape_cast %68 : vector<1x8x256xf32> to vector<8x256xf32>
    %70 = arith.mulf %69, %67 : vector<8x256xf32>
    %71 = arith.addf %66, %70 : vector<8x256xf32>
    %c241_i32 = arith.constant 241 : i32
    %72 = tpu.dynamic_rotate %42 by %c241_i32 dim 1 : vector<8x256xf32>, i32 -> vector<8x256xf32>
    %c6 = arith.constant 6 : index
    %c0_38 = arith.constant 0 : index
    %c0_39 = arith.constant 0 : index
    %73 = vector.load %arg2[%c6, %c0_38, %c0_39] : memref<10x8x256xf32, #tpu.memory_space<vmem>>, vector<1x8x256xf32>
    %74 = vector.shape_cast %73 : vector<1x8x256xf32> to vector<8x256xf32>
    %75 = arith.mulf %74, %72 : vector<8x256xf32>
    %76 = arith.addf %71, %75 : vector<8x256xf32>
    %c240_i32 = arith.constant 240 : i32
    %77 = tpu.dynamic_rotate %42 by %c240_i32 dim 1 : vector<8x256xf32>, i32 -> vector<8x256xf32>
    %c7 = arith.constant 7 : index
    %c0_40 = arith.constant 0 : index
    %c0_41 = arith.constant 0 : index
    %78 = vector.load %arg2[%c7, %c0_40, %c0_41] : memref<10x8x256xf32, #tpu.memory_space<vmem>>, vector<1x8x256xf32>
    %79 = vector.shape_cast %78 : vector<1x8x256xf32> to vector<8x256xf32>
    %80 = arith.mulf %79, %77 : vector<8x256xf32>
    %81 = arith.addf %76, %80 : vector<8x256xf32>
    %c239_i32 = arith.constant 239 : i32
    %82 = tpu.dynamic_rotate %42 by %c239_i32 dim 1 : vector<8x256xf32>, i32 -> vector<8x256xf32>
    %c8 = arith.constant 8 : index
    %c0_42 = arith.constant 0 : index
    %c0_43 = arith.constant 0 : index
    %83 = vector.load %arg2[%c8, %c0_42, %c0_43] : memref<10x8x256xf32, #tpu.memory_space<vmem>>, vector<1x8x256xf32>
    %84 = vector.shape_cast %83 : vector<1x8x256xf32> to vector<8x256xf32>
    %85 = arith.mulf %84, %82 : vector<8x256xf32>
    %86 = arith.addf %81, %85 : vector<8x256xf32>
    %87 = vector.extract_strided_slice %86 {offsets = [0, 0], sizes = [4, 256], strides = [1, 1]} : vector<8x256xf32> to vector<4x256xf32>
    %88 = vector.extract_strided_slice %86 {offsets = [4, 0], sizes = [4, 256], strides = [1, 1]} : vector<8x256xf32> to vector<4x256xf32>
    %c0_44 = arith.constant 0 : index
    %c0_45 = arith.constant 0 : index
    %c0_46 = arith.constant 0 : index
    %89 = vector.load %arg4[%c0_44, %c0_45, %c0_46] : memref<5x4x256xf32, #tpu.memory_space<vmem>>, vector<1x4x256xf32>
    %90 = vector.shape_cast %89 : vector<1x4x256xf32> to vector<4x256xf32>
    %91 = vector.extract_strided_slice %87 {offsets = [0, 0], sizes = [1, 256], strides = [1, 1]} : vector<4x256xf32> to vector<1x256xf32>
    %92 = vector.broadcast %91 : vector<1x256xf32> to vector<4x256xf32>
    %93 = arith.mulf %90, %92 : vector<4x256xf32>
    %94 = arith.addf %5, %93 : vector<4x256xf32>
    %c0_47 = arith.constant 0 : index
    %c0_48 = arith.constant 0 : index
    %c0_49 = arith.constant 0 : index
    %95 = vector.load %arg5[%c0_47, %c0_48, %c0_49] : memref<5x4x256xf32, #tpu.memory_space<vmem>>, vector<1x4x256xf32>
    %96 = vector.shape_cast %95 : vector<1x4x256xf32> to vector<4x256xf32>
    %97 = vector.extract_strided_slice %88 {offsets = [0, 0], sizes = [1, 256], strides = [1, 1]} : vector<4x256xf32> to vector<1x256xf32>
    %98 = vector.broadcast %97 : vector<1x256xf32> to vector<4x256xf32>
    %99 = arith.mulf %96, %98 : vector<4x256xf32>
    %100 = arith.addf %7, %99 : vector<4x256xf32>
    %c1_50 = arith.constant 1 : index
    %c0_51 = arith.constant 0 : index
    %c0_52 = arith.constant 0 : index
    %101 = vector.load %arg4[%c1_50, %c0_51, %c0_52] : memref<5x4x256xf32, #tpu.memory_space<vmem>>, vector<1x4x256xf32>
    %102 = vector.shape_cast %101 : vector<1x4x256xf32> to vector<4x256xf32>
    %103 = vector.extract_strided_slice %87 {offsets = [1, 0], sizes = [1, 256], strides = [1, 1]} : vector<4x256xf32> to vector<1x256xf32>
    %104 = vector.broadcast %103 : vector<1x256xf32> to vector<4x256xf32>
    %105 = arith.mulf %102, %104 : vector<4x256xf32>
    %106 = arith.addf %94, %105 : vector<4x256xf32>
    %c1_53 = arith.constant 1 : index
    %c0_54 = arith.constant 0 : index
    %c0_55 = arith.constant 0 : index
    %107 = vector.load %arg5[%c1_53, %c0_54, %c0_55] : memref<5x4x256xf32, #tpu.memory_space<vmem>>, vector<1x4x256xf32>
    %108 = vector.shape_cast %107 : vector<1x4x256xf32> to vector<4x256xf32>
    %109 = vector.extract_strided_slice %88 {offsets = [1, 0], sizes = [1, 256], strides = [1, 1]} : vector<4x256xf32> to vector<1x256xf32>
    %110 = vector.broadcast %109 : vector<1x256xf32> to vector<4x256xf32>
    %111 = arith.mulf %108, %110 : vector<4x256xf32>
    %112 = arith.addf %100, %111 : vector<4x256xf32>
    %c2_56 = arith.constant 2 : index
    %c0_57 = arith.constant 0 : index
    %c0_58 = arith.constant 0 : index
    %113 = vector.load %arg4[%c2_56, %c0_57, %c0_58] : memref<5x4x256xf32, #tpu.memory_space<vmem>>, vector<1x4x256xf32>
    %114 = vector.shape_cast %113 : vector<1x4x256xf32> to vector<4x256xf32>
    %115 = vector.extract_strided_slice %87 {offsets = [2, 0], sizes = [1, 256], strides = [1, 1]} : vector<4x256xf32> to vector<1x256xf32>
    %116 = vector.broadcast %115 : vector<1x256xf32> to vector<4x256xf32>
    %117 = arith.mulf %114, %116 : vector<4x256xf32>
    %118 = arith.addf %106, %117 : vector<4x256xf32>
    %c2_59 = arith.constant 2 : index
    %c0_60 = arith.constant 0 : index
    %c0_61 = arith.constant 0 : index
    %119 = vector.load %arg5[%c2_59, %c0_60, %c0_61] : memref<5x4x256xf32, #tpu.memory_space<vmem>>, vector<1x4x256xf32>
    %120 = vector.shape_cast %119 : vector<1x4x256xf32> to vector<4x256xf32>
    %121 = vector.extract_strided_slice %88 {offsets = [2, 0], sizes = [1, 256], strides = [1, 1]} : vector<4x256xf32> to vector<1x256xf32>
    %122 = vector.broadcast %121 : vector<1x256xf32> to vector<4x256xf32>
    %123 = arith.mulf %120, %122 : vector<4x256xf32>
    %124 = arith.addf %112, %123 : vector<4x256xf32>
    %c3_62 = arith.constant 3 : index
    %c0_63 = arith.constant 0 : index
    %c0_64 = arith.constant 0 : index
    %125 = vector.load %arg4[%c3_62, %c0_63, %c0_64] : memref<5x4x256xf32, #tpu.memory_space<vmem>>, vector<1x4x256xf32>
    %126 = vector.shape_cast %125 : vector<1x4x256xf32> to vector<4x256xf32>
    %127 = vector.extract_strided_slice %87 {offsets = [3, 0], sizes = [1, 256], strides = [1, 1]} : vector<4x256xf32> to vector<1x256xf32>
    %128 = vector.broadcast %127 : vector<1x256xf32> to vector<4x256xf32>
    %129 = arith.mulf %126, %128 : vector<4x256xf32>
    %130 = arith.addf %118, %129 : vector<4x256xf32>
    %c3_65 = arith.constant 3 : index
    %c0_66 = arith.constant 0 : index
    %c0_67 = arith.constant 0 : index
    %131 = vector.load %arg5[%c3_65, %c0_66, %c0_67] : memref<5x4x256xf32, #tpu.memory_space<vmem>>, vector<1x4x256xf32>
    %132 = vector.shape_cast %131 : vector<1x4x256xf32> to vector<4x256xf32>
    %133 = vector.extract_strided_slice %88 {offsets = [3, 0], sizes = [1, 256], strides = [1, 1]} : vector<4x256xf32> to vector<1x256xf32>
    %134 = vector.broadcast %133 : vector<1x256xf32> to vector<4x256xf32>
    %135 = arith.mulf %132, %134 : vector<4x256xf32>
    %136 = arith.addf %124, %135 : vector<4x256xf32>
    %137 = arith.negf %130 : vector<4x256xf32>
    %138 = math.exp %137 : vector<4x256xf32>
    %cst_68 = arith.constant 1.000000e+00 : f32
    %139 = vector.broadcast %cst_68 : f32 to vector<4x256xf32>
    %140 = arith.addf %139, %138 : vector<4x256xf32>
    %141 = arith.divf %139, %140 : vector<4x256xf32>
    %142 = arith.mulf %130, %141 : vector<4x256xf32>
    %143 = arith.negf %136 : vector<4x256xf32>
    %144 = math.exp %143 : vector<4x256xf32>
    %cst_69 = arith.constant 1.000000e+00 : f32
    %145 = vector.broadcast %cst_69 : f32 to vector<4x256xf32>
    %146 = arith.addf %145, %144 : vector<4x256xf32>
    %147 = arith.divf %145, %146 : vector<4x256xf32>
    %148 = arith.mulf %136, %147 : vector<4x256xf32>
    %149 = vector.extract_strided_slice %142 {offsets = [0, 0], sizes = [1, 256], strides = [1, 1]} : vector<4x256xf32> to vector<1x256xf32>
    %150 = vector.extract_strided_slice %148 {offsets = [0, 0], sizes = [1, 256], strides = [1, 1]} : vector<4x256xf32> to vector<1x256xf32>
    %151 = vector.extract_strided_slice %142 {offsets = [1, 0], sizes = [1, 256], strides = [1, 1]} : vector<4x256xf32> to vector<1x256xf32>
    %152 = vector.extract_strided_slice %148 {offsets = [1, 0], sizes = [1, 256], strides = [1, 1]} : vector<4x256xf32> to vector<1x256xf32>
    %153 = vector.extract_strided_slice %142 {offsets = [2, 0], sizes = [1, 256], strides = [1, 1]} : vector<4x256xf32> to vector<1x256xf32>
    %154 = vector.extract_strided_slice %148 {offsets = [2, 0], sizes = [1, 256], strides = [1, 1]} : vector<4x256xf32> to vector<1x256xf32>
    %155 = vector.extract_strided_slice %142 {offsets = [3, 0], sizes = [1, 256], strides = [1, 1]} : vector<4x256xf32> to vector<1x256xf32>
    %156 = vector.extract_strided_slice %148 {offsets = [3, 0], sizes = [1, 256], strides = [1, 1]} : vector<4x256xf32> to vector<1x256xf32>
    %157 = tpu.concatenate %149, %150, %151, %152, %153, %154, %155, %156 in 0 : vector<1x256xf32>, vector<1x256xf32>, vector<1x256xf32>, vector<1x256xf32>, vector<1x256xf32>, vector<1x256xf32>, vector<1x256xf32>, vector<1x256xf32> -> vector<8x256xf32>
    %c0_70 = arith.constant 0 : index
    %c0_71 = arith.constant 0 : index
    %c0_72 = arith.constant 0 : index
    %158 = vector.load %arg6[%c0_70, %c0_71, %c0_72] : memref<1x8x256xf32, #tpu.memory_space<vmem>>, vector<1x8x256xf32>
    %159 = vector.shape_cast %158 : vector<1x8x256xf32> to vector<8x256xf32>
    %160 = vector.shape_cast %157 : vector<8x256xf32> to vector<1x8x256xf32>
    tpu.vector_store %arg6[%c0_70, %c0_71, %c0_72], %160 {strides = array<i32>} : memref<1x8x256xf32, #tpu.memory_space<vmem>>, vector<1x8x256xf32>,
    return
  }
  func.func @transform_0(%arg0: i32) -> (i32, i32, i32) {
    %c0_i32 = arith.constant 0 : i32
    %c0_i32_0 = arith.constant 0 : i32
    %c0_i32_1 = arith.constant 0 : i32
    return %arg0, %c0_i32, %c0_i32_0 : i32, i32, i32
  }
  func.func @transform_1(%arg0: i32) -> (i32, i32, i32) {
    %c0_i32 = arith.constant 0 : i32
    %c0_i32_0 = arith.constant 0 : i32
    %c0_i32_1 = arith.constant 0 : i32
    %c0_i32_2 = arith.constant 0 : i32
    return %c0_i32, %c0_i32_0, %c0_i32_1 : i32, i32, i32
  }
  func.func @transform_2(%arg0: i32) -> (i32, i32, i32) {
    %c0_i32 = arith.constant 0 : i32
    %c0_i32_0 = arith.constant 0 : i32
    %c0_i32_1 = arith.constant 0 : i32
    %c0_i32_2 = arith.constant 0 : i32
    return %c0_i32, %c0_i32_0, %c0_i32_1 : i32, i32, i32
  }
  func.func @transform_3(%arg0: i32) -> (i32, i32, i32) {
    %c0_i32 = arith.constant 0 : i32
    %c0_i32_0 = arith.constant 0 : i32
    %c0_i32_1 = arith.constant 0 : i32
    %c0_i32_2 = arith.constant 0 : i32
    return %c0_i32, %c0_i32_0, %c0_i32_1 : i32, i32, i32
  }
  func.func @transform_4(%arg0: i32) -> (i32, i32, i32) {
    %c0_i32 = arith.constant 0 : i32
    %c0_i32_0 = arith.constant 0 : i32
    %c0_i32_1 = arith.constant 0 : i32
    %c0_i32_2 = arith.constant 0 : i32
    return %c0_i32, %c0_i32_0, %c0_i32_1 : i32, i32, i32
  }
  func.func @transform_5(%arg0: i32) -> (i32, i32, i32) {
    %c0_i32 = arith.constant 0 : i32
    %c0_i32_0 = arith.constant 0 : i32
    %c0_i32_1 = arith.constant 0 : i32
    return %arg0, %c0_i32, %c0_i32_0 : i32, i32, i32
  }
}

</mosaic_0001>

<llo_original>
// kernel: tpu_custom_call.1
$region0: #{tpu_custom_call.1}
  #allocation0 [shape = 'u32[]', space=smem, size = 0x4, offset = 0x4, fixed_abs, tag = 'smem constant byte address 0x4 - core index']
  #allocation1 [shape = 'u32[144,128]{1,0:T(1,128)}', space=vmem, size = 0x12000, scoped, tag = 'internal scratch']
  %s0 = inlined_call_operand.hbm [shape: f32[2,8,256], index: 0, kind: input, shape index: {}]
  %s1 = inlined_call_operand.hbm [shape: f32[10,8,256], index: 1, kind: input, shape index: {}]
  %s2 = inlined_call_operand.hbm [shape: f32[5,4,256], index: 2, kind: input, shape index: {}]
  %s3 = inlined_call_operand.hbm [shape: f32[5,4,256], index: 3, kind: input, shape index: {}]
  %s4 = inlined_call_operand.hbm [shape: f32[5,4,256], index: 4, kind: input, shape index: {}]
  %s5 = inlined_call_operand.hbm [shape: f32[2,8,256], index: 5, kind: output, shape index: {}]
  %s6 = sld [smem:[#allocation0]]
  $region73: #{tpu_custom_call.1} parent=0
    _
  %s8 = ssub.s32 1, %s6
  %s9 = scalar_select 0, %s8, %s6
  $region1: #{tpu_custom_call.1} parent=0
    #allocation2 [shape = 'u8[16384]{0}', space=vmem, size = 0x4000, scoped, tag = 'input window, operand 0']
    #allocation3 [shape = 's32[2]{0}', space=sflag, size = 0x8, scoped, tag = 'scoped memory for tpu_custom_call.1']
    #allocation4 [shape = 's32[2]{0}', space=sflag, size = 0x8, scoped, tag = 'scoped memory for tpu_custom_call.1']
    #allocation5 [shape = 'u8[81920]{0}', space=vmem, size = 0x14000, scoped, tag = 'input window, operand 1, single buffered']
    #allocation6 [shape = 's32[1]{0}', space=sflag, size = 0x4, scoped, tag = 'scoped memory for tpu_custom_call.1']
    #allocation7 [shape = 'u8[20480]{0}', space=vmem, size = 0x5000, scoped, tag = 'input window, operand 2, single buffered']
    #allocation8 [shape = 'u8[20480]{0}', space=vmem, size = 0x5000, scoped, tag = 'input window, operand 3, single buffered']
    #allocation9 [shape = 's32[1]{0}', space=sflag, size = 0x4, scoped, tag = 'scoped memory for tpu_custom_call.1']
    #allocation10 [shape = 'u8[20480]{0}', space=vmem, size = 0x5000, scoped, tag = 'input window, operand 4, single buffered']
    #allocation11 [shape = 'u8[16384]{0}', space=vmem, size = 0x4000, scoped, tag = 'output window, operand 0']
    %10 = vsyncpa [#allocation3], 0
    %s11 = scalar_lea.sflag [#allocation3], 1
    %12 = vsyncpa %s11, 0
    %13 = vsyncpa [#allocation6], 0
    %14 = vsyncpa [#allocation9], 0
    %15 = vsyncpa [#allocation4], 0
    %s16 = scalar_lea.sflag [#allocation4], 1
    %17 = vsyncpa %s16, 0
    loop: start=0, step=1, limit=4
    $region2: #{tpu_custom_call.1} parent=1 // loop_pre_header
      _
    $region3: #{tpu_custom_call.1} parent=1 // loop_header
      %s19 = sphi 0, %s23
      %p20 = scmp.ge.s32.totalorder %s19, 4
      %s29 = sphi 0, %s31
      %s32 = sphi 0, %s29
      %s33 = sphi 0, %s32
      %s49 = sphi 0, %s33
      %s53 = sphi 0, %s53
      %s55 = sphi 0, %s53
      %s56 = sphi 0, %s55
      %s70 = sphi 0, %s56
      %s74 = sphi 0, %s74
      %s76 = sphi 0, %s74
      %s77 = sphi 0, %s76
      %s91 = sphi 0, %s77
      %s95 = sphi 0, %s95
      %s97 = sphi 0, %s95
      %s98 = sphi 0, %s97
      %s112 = sphi 0, %s98
      %s116 = sphi 0, %s116
      %s118 = sphi 0, %s116
      %s119 = sphi 0, %s118
      %s133 = sphi 0, %s119
      %s139 = sphi 0, %s141
      %s142 = sphi 0, %s139
      %s143 = sphi 0, %s142
      %s159 = sphi 0, %s143
    $region4: #{tpu_custom_call.1} parent=1 // loop_header_branch
      %22 = sbr.rel (%p20) target = $region8
    $region5: #{tpu_custom_call.1} parent=1 // loop_body
      %s24 = ssub.s32 %s19, 1
      %s25 = ssub.s32 %s19, 2
      %s26 = sadd.s32 %s19, 1
      %s27 = ssub.s32 %s19, %s26
      %p28 = scmp.eq.s32.totalorder %s27, 0
      %s30 = sadd.s32 %s29, 1
      %s31 = scalar_select %p28, %s29, %s30
      %p34 = pneg %p28
      %p35 = scmp.eq.s32.totalorder %s19, 1
      %p36 = por %p34, %p35
      %p37 = scmp.ne.s32.totalorder %s29, %s32
      %p38 = scmp.eq.s32.totalorder %s19, 0
      %p39 = por %p37, %p38
      %p40 = scmp.ne.s32.totalorder %s29, %s32
      %p41 = scmp.eq.s32.totalorder %s24, 1
      %p42 = por %p40, %p41
      %p43 = scmp.ne.s32.totalorder %s32, %s33
      %p44 = scmp.eq.s32.totalorder %s24, 0
      %p45 = por %p43, %p44
      %p46 = scmp.ne.s32.totalorder %s32, %s33
      %p47 = scmp.eq.s32.totalorder %s25, 1
      %p48 = por %p46, %p47
      %p50 = scmp.ne.s32.totalorder %s33, %s49
      %p51 = scmp.eq.s32.totalorder %s25, 0
      %p52 = por %p50, %p51
      %s54 = sadd.s32 %s53, 1
      %p57 = scmp.eq.s32.totalorder %s19, 1
      %p58 = scmp.ne.s32.totalorder %s53, %s55
      %p59 = scmp.eq.s32.totalorder %s19, 0
      %p60 = por %p58, %p59
      %p61 = scmp.ne.s32.totalorder %s53, %s55
      %p62 = scmp.eq.s32.totalorder %s24, 1
      %p63 = por %p61, %p62
      %p64 = scmp.ne.s32.totalorder %s55, %s56
      %p65 = scmp.eq.s32.totalorder %s24, 0
      %p66 = por %p64, %p65
      %p67 = scmp.ne.s32.totalorder %s55, %s56
      %p68 = scmp.eq.s32.totalorder %s25, 1
      %p69 = por %p67, %p68
      %p71 = scmp.ne.s32.totalorder %s56, %s70
      %p72 = scmp.eq.s32.totalorder %s25, 0
      %p73 = por %p71, %p72
      %s75 = sadd.s32 %s74, 1
      %p78 = scmp.eq.s32.totalorder %s19, 1
      %p79 = scmp.ne.s32.totalorder %s74, %s76
      %p80 = scmp.eq.s32.totalorder %s19, 0
      %p81 = por %p79, %p80
      %p82 = scmp.ne.s32.totalorder %s74, %s76
      %p83 = scmp.eq.s32.totalorder %s24, 1
      %p84 = por %p82, %p83
      %p85 = scmp.ne.s32.totalorder %s76, %s77
      %p86 = scmp.eq.s32.totalorder %s24, 0
      %p87 = por %p85, %p86
      %p88 = scmp.ne.s32.totalorder %s76, %s77
      %p89 = scmp.eq.s32.totalorder %s25, 1
      %p90 = por %p88, %p89
      %p92 = scmp.ne.s32.totalorder %s77, %s91
      %p93 = scmp.eq.s32.totalorder %s25, 0
      %p94 = por %p92, %p93
      %s96 = sadd.s32 %s95, 1
      %p99 = scmp.eq.s32.totalorder %s19, 1
      %p100 = scmp.ne.s32.totalorder %s95, %s97
      %p101 = scmp.eq.s32.totalorder %s19, 0
      %p102 = por %p100, %p101
      %p103 = scmp.ne.s32.totalorder %s95, %s97
      %p104 = scmp.eq.s32.totalorder %s24, 1
      %p105 = por %p103, %p104
      %p106 = scmp.ne.s32.totalorder %s97, %s98
      %p107 = scmp.eq.s32.totalorder %s24, 0
      %p108 = por %p106, %p107
      %p109 = scmp.ne.s32.totalorder %s97, %s98
      %p110 = scmp.eq.s32.totalorder %s25, 1
      %p111 = por %p109, %p110
      %p113 = scmp.ne.s32.totalorder %s98, %s112
      %p114 = scmp.eq.s32.totalorder %s25, 0
      %p115 = por %p113, %p114
      %s117 = sadd.s32 %s116, 1
      %p120 = scmp.eq.s32.totalorder %s19, 1
      %p121 = scmp.ne.s32.totalorder %s116, %s118
      %p122 = scmp.eq.s32.totalorder %s19, 0
      %p123 = por %p121, %p122
      %p124 = scmp.ne.s32.totalorder %s116, %s118
      %p125 = scmp.eq.s32.totalorder %s24, 1
      %p126 = por %p124, %p125
      %p127 = scmp.ne.s32.totalorder %s118, %s119
      %p128 = scmp.eq.s32.totalorder %s24, 0
      %p129 = por %p127, %p128
      %p130 = scmp.ne.s32.totalorder %s118, %s119
      %p131 = scmp.eq.s32.totalorder %s25, 1
      %p132 = por %p130, %p131
      %p134 = scmp.ne.s32.totalorder %s119, %s133
      %p135 = scmp.eq.s32.totalorder %s25, 0
      %p136 = por %p134, %p135
      %s137 = ssub.s32 %s19, %s26
      %p138 = scmp.eq.s32.totalorder %s137, 0
      %s140 = sadd.s32 %s139, 1
      %s141 = scalar_select %p138, %s139, %s140
      %p144 = pneg %p138
      %p145 = scmp.eq.s32.totalorder %s19, 1
      %p146 = por %p144, %p145
      %p147 = scmp.ne.s32.totalorder %s139, %s142
      %p148 = scmp.eq.s32.totalorder %s19, 0
      %p149 = por %p147, %p148
      %p150 = scmp.ne.s32.totalorder %s139, %s142
      %p151 = scmp.eq.s32.totalorder %s24, 1
      %p152 = por %p150, %p151
      %p153 = scmp.ne.s32.totalorder %s142, %s143
      %p154 = scmp.eq.s32.totalorder %s24, 0
      %p155 = por %p153, %p154
      %p156 = scmp.ne.s32.totalorder %s142, %s143
      %p157 = scmp.eq.s32.totalorder %s25, 1
      %p158 = por %p156, %p157
      %p160 = scmp.ne.s32.totalorder %s143, %s159
      %p161 = scmp.eq.s32.totalorder %s25, 0
      %p162 = por %p160, %p161
      %p163 = scmp.le.s32.totalorder 1, %s19
      %p164 = scmp.lt.s32.totalorder %s19, 3
      %p165 = pnand %p163, %p164
      %p166 = pneg %p165
      // Predicated region
      $region9: #{tpu_custom_call.1} parent=5 // pred_check
        _
      $region10: #{tpu_custom_call.1} parent=5 // pred_check_branch
        %168 = sbr.rel (%p165) target = $region12
      $region11: #{tpu_custom_call.1} parent=5 // pred_region
        %s169 = ssub.s32 %s19, 1
        // Predicated region
        $region13: #{tpu_custom_call.1} parent=11 // pred_check
          %p170 = pneg %p66
        $region14: #{tpu_custom_call.1} parent=11 // pred_check_branch
          %172 = sbr.rel (%p170) target = $region16
        $region15: #{tpu_custom_call.1} parent=11 // pred_region
          %s174 = ssub.s32 2560, 2560
          %175 = vsyncadd [#allocation6], %s174
          %s176 = sshll.u32 [#allocation5], 4
          %s177 = int_to_ptr.vmem [resolvable:$true] %s176
          %182 = dma.hbm_to_vmem [thread:$0]  %s1, 2560, %s177, [#allocation6], 256, 256, 16
        $region16: #{tpu_custom_call.1} parent=11 // pred_fallthru
          _
        // Predicated region
        $region17: #{tpu_custom_call.1} parent=11 // pred_check
          %p183 = pneg %p87
        $region18: #{tpu_custom_call.1} parent=11 // pred_check_branch
          %185 = sbr.rel (%p183) target = $region20
        $region19: #{tpu_custom_call.1} parent=11 // pred_region
          %s187 = ssub.s32 640, 640
          %188 = vsyncadd [#allocation6], %s187
          %s189 = sshll.u32 [#allocation7], 4
          %s190 = int_to_ptr.vmem [resolvable:$true] %s189
          %195 = dma.hbm_to_vmem [thread:$0]  %s2, 640, %s190, [#allocation6], 128, 128, 8
        $region20: #{tpu_custom_call.1} parent=11 // pred_fallthru
          _
        // Predicated region
        $region21: #{tpu_custom_call.1} parent=11 // pred_check
          %p196 = pneg %p108
        $region22: #{tpu_custom_call.1} parent=11 // pred_check_branch
          %198 = sbr.rel (%p196) target = $region24
        $region23: #{tpu_custom_call.1} parent=11 // pred_region
          %s200 = ssub.s32 640, 640
          %201 = vsyncadd [#allocation9], %s200
          %s202 = sshll.u32 [#allocation8], 4
          %s203 = int_to_ptr.vmem [resolvable:$true] %s202
          %208 = dma.hbm_to_vmem [thread:$0]  %s3, 640, %s203, [#allocation9], 128, 128, 8
        $region24: #{tpu_custom_call.1} parent=11 // pred_fallthru
          _
        // Predicated region
        $region25: #{tpu_custom_call.1} parent=11 // pred_check
          %p209 = pneg %p129
        $region26: #{tpu_custom_call.1} parent=11 // pred_check_branch
          %211 = sbr.rel (%p209) target = $region28
        $region27: #{tpu_custom_call.1} parent=11 // pred_region
          %s213 = ssub.s32 640, 640
          %214 = vsyncadd [#allocation9], %s213
          %s215 = sshll.u32 [#allocation10], 4
          %s216 = int_to_ptr.vmem [resolvable:$true] %s215
          %221 = dma.hbm_to_vmem [thread:$0]  %s4, 640, %s216, [#allocation9], 128, 128, 8
        $region28: #{tpu_custom_call.1} parent=11 // pred_fallthru
          _
      $region12: #{tpu_custom_call.1} parent=5 // pred_fallthru
        _
      %p222 = scmp.lt.s32.totalorder %s19, 2
      // Predicated region
      $region29: #{tpu_custom_call.1} parent=5 // pred_check
        %p223 = pneg %p222
      $region30: #{tpu_custom_call.1} parent=5 // pred_check_branch
        %225 = sbr.rel (%p223) target = $region32
      $region31: #{tpu_custom_call.1} parent=5 // pred_region
        // Predicated region
        $region33: #{tpu_custom_call.1} parent=31 // pred_check
          %p226 = pneg %p39
        $region34: #{tpu_custom_call.1} parent=31 // pred_check_branch
          %228 = sbr.rel (%p226) target = $region36
        $region35: #{tpu_custom_call.1} parent=31 // pred_region
          %s229 = sand.u32 %s29, 1
          %s230 = scalar_lea.sflag [#allocation3], %s229
          %s231 = sand.u32 %s29, 1
          %s232 = smul.addr %s231, 16
          %s233 = scalar_lea.vmem [#allocation2], %s232
          %s235 = ssub.s32 256, 256
          %236 = vsyncadd %s230, %s235
          %s237 = smul.addr %s19, 2
          %s238 = smul.addr %s237, 128
          %s239 = scalar_lea.hbm %s0, %s238
          %s241 = sshll.u32 %s233, 4
          %s242 = int_to_ptr.vmem [resolvable:$true] %s241
          %244 = dma.hbm_to_vmem [thread:$0]  %s239, 256, %s242, %s230
        $region36: #{tpu_custom_call.1} parent=31 // pred_fallthru
          _
      $region32: #{tpu_custom_call.1} parent=5 // pred_fallthru
        _
      %p245 = scmp.le.s32.totalorder 1, %s19
      %p246 = scmp.lt.s32.totalorder %s19, 3
      %p247 = pnand %p245, %p246
      %p248 = pneg %p247
      // Predicated region
      $region37: #{tpu_custom_call.1} parent=5 // pred_check
        _
      $region38: #{tpu_custom_call.1} parent=5 // pred_check_branch
        %250 = sbr.rel (%p247) target = $region40
      $region39: #{tpu_custom_call.1} parent=5 // pred_region
        %s251 = ssub.s32 %s19, 1
        %s252 = sand.u32 %s32, 1
        %s253 = scalar_lea.sflag [#allocation3], %s252
        %s254 = sand.u32 %s32, 1
        %s255 = smul.addr %s254, 16
        %s256 = scalar_lea.vmem [#allocation2], %s255
        // Predicated region
        $region41: #{tpu_custom_call.1} parent=39 // pred_check
          %p257 = pneg %p45
        $region42: #{tpu_custom_call.1} parent=39 // pred_check_branch
          %259 = sbr.rel (%p257) target = $region44
        $region43: #{tpu_custom_call.1} parent=39 // pred_region
          %260 = dma.done %s253, 256
        $region44: #{tpu_custom_call.1} parent=39 // pred_fallthru
          _
        // Predicated region
        $region45: #{tpu_custom_call.1} parent=39 // pred_check
          %p261 = pneg %p66
        $region46: #{tpu_custom_call.1} parent=39 // pred_check_branch
          %263 = sbr.rel (%p261) target = $region48
        $region47: #{tpu_custom_call.1} parent=39 // pred_region
          %264 = dma.done [#allocation6], 2560
        $region48: #{tpu_custom_call.1} parent=39 // pred_fallthru
          _
        // Predicated region
        $region49: #{tpu_custom_call.1} parent=39 // pred_check
          %p265 = pneg %p87
        $region50: #{tpu_custom_call.1} parent=39 // pred_check_branch
          %267 = sbr.rel (%p265) target = $region52
        $region51: #{tpu_custom_call.1} parent=39 // pred_region
          %268 = dma.done [#allocation6], 640
        $region52: #{tpu_custom_call.1} parent=39 // pred_fallthru
          _
        // Predicated region
        $region53: #{tpu_custom_call.1} parent=39 // pred_check
          %p269 = pneg %p108
        $region54: #{tpu_custom_call.1} parent=39 // pred_check_branch
          %271 = sbr.rel (%p269) target = $region56
        $region55: #{tpu_custom_call.1} parent=39 // pred_region
          %272 = dma.done [#allocation9], 640
        $region56: #{tpu_custom_call.1} parent=39 // pred_fallthru
          _
        // Predicated region
        $region57: #{tpu_custom_call.1} parent=39 // pred_check
          %p273 = pneg %p129
        $region58: #{tpu_custom_call.1} parent=39 // pred_check_branch
          %275 = sbr.rel (%p273) target = $region60
        $region59: #{tpu_custom_call.1} parent=39 // pred_region
          %276 = dma.done [#allocation9], 640
        $region60: #{tpu_custom_call.1} parent=39 // pred_fallthru
          _
        %s277 = sand.u32 %s32, 1
        %s278 = scalar_lea.sflag [#allocation3], %s277
        %s279 = sand.u32 %s32, 1
        %s280 = smul.addr %s279, 16
        %s281 = scalar_lea.vmem [#allocation2], %s280
        %p282 = pneg %p45
        %p283 = pneg %p42
        %p284 = pneg %p66
        %p285 = pneg %p63
        %p286 = pneg %p87
        %p287 = pneg %p84
        %p288 = pneg %p108
        %p289 = pneg %p105
        %p290 = pneg %p129
        %p291 = pneg %p126
        %p292 = pneg %p155
        %p293 = pneg %p152
        %s294 = sand.u32 %s142, 1
        %s295 = scalar_lea.sflag [#allocation4], %s294
        %s296 = sand.u32 %s142, 1
        %s297 = smul.addr %s296, 16
        %s298 = scalar_lea.vmem [#allocation11], %s297
        %s299 = scalar_lea.vmem [#allocation5], 144
        %v300 = vld [vmem:[%s299] sm:$0xff]
        %v301 = vld [vmem:[%s299 + $0x8] sm:$0xff]
        %s302 = scalar_lea.vmem [#allocation7], 32
        %v303 = vld [vmem:[%s302] sm:$0xff]
        %s304 = scalar_lea.vmem [#allocation8], 32
        %v305 = vld [vmem:[%s304] sm:$0xff]
        %s306 = scalar_lea.vmem [#allocation10], 32
        %v307 = vld [vmem:[%s306] sm:$0xff]
        %v308 = vld [vmem:[%s256] sm:$0xff]
        %v309 = vld [vmem:[%s256 + $0x8] sm:$0xff]
        %v310 = vld [vmem:[#allocation7] sm:$0xff]
        %v311 = vlaneseq
        %v312 = vshrl.u32 %v311, 7
        %v313 = vsub.s32 4, %v312
        %v314 = vrot.slane %v308, %v313
        %v315 = vlaneseq
        %v316 = vshrl.u32 %v315, 7
        %v317 = vsub.s32 4, %v316
        %v318 = vrot.slane %v309, %v317
        %v321 = vcombine.low %v314, %v318
        %v323 = vmul.f32 %v310, %v321
        %v324 = vadd.f32 %v303, %v323
        %s325 = scalar_lea.vmem [#allocation7], 8
        %v326 = vld [vmem:[%s325] sm:$0xff]
        %v327 = vlaneseq
        %v328 = vshrl.u32 %v327, 7
        %v329 = vsub.s32 5, %v328
        %v330 = vrot.slane %v308, %v329
        %v331 = vlaneseq
        %v332 = vshrl.u32 %v331, 7
        %v333 = vsub.s32 5, %v332
        %v334 = vrot.slane %v309, %v333
        %v337 = vcombine.low %v330, %v334
        %v339 = vmul.f32 %v326, %v337
        %v340 = vadd.f32 %v324, %v339
        %s341 = scalar_lea.vmem [#allocation7], 16
        %v342 = vld [vmem:[%s341] sm:$0xff]
        %v343 = vlaneseq
        %v344 = vshrl.u32 %v343, 7
        %v345 = vsub.s32 6, %v344
        %v346 = vrot.slane %v308, %v345
        %v347 = vlaneseq
        %v348 = vshrl.u32 %v347, 7
        %v349 = vsub.s32 6, %v348
        %v350 = vrot.slane %v309, %v349
        %v353 = vcombine.low %v346, %v350
        %v355 = vmul.f32 %v342, %v353
        %v356 = vadd.f32 %v340, %v355
        %s357 = scalar_lea.vmem [#allocation7], 24
        %v358 = vld [vmem:[%s357] sm:$0xff]
        %v359 = vlaneseq
        %v360 = vshrl.u32 %v359, 7
        %v361 = vsub.s32 7, %v360
        %v362 = vrot.slane %v308, %v361
        %v363 = vlaneseq
        %v364 = vshrl.u32 %v363, 7
        %v365 = vsub.s32 7, %v364
        %v366 = vrot.slane %v309, %v365
        %v369 = vcombine.low %v362, %v366
        %v371 = vmul.f32 %v358, %v369
        %v372 = vadd.f32 %v356, %v371
        %v373 = vxor.u32 %v372, 2147483648
        %v374 = vmul.f32 %v373, 1.442695
        %v375 = vpow.pop %v374
        %v376 = vadd.f32 %v375, 1.0
        %v377 = vrcp.pop %v376
        %v378 = vmul.f32 1.0, %v377
        %v379 = vmul.f32 %v372, %v378
        %v381 = vcombine.low %v379, %v379
        %vm383 = vcmask 1043456
        %v384 = vsel %vm383, %v308, %v381
        %v385 = vsel %vm383, %v309, %v379
        %386 = vrot.lane.b32.xlu0 %v384, 17
        %v387 = vpop.permute.xlu0 %386
        %388 = vrot.lane.b32.xlu0 %v385, 17
        %v389 = vpop.permute.xlu0 %388
        %v390 = vlaneseq
        %v391 = vand.u32 %v390, 127
        %vm392 = vcmp.lt.s32.totalorder %v391, 17
        %v393 = vsel %vm392, %v387, %v389
        %v394 = vsel %vm392, %v389, %v387
        %v395 = vld [vmem:[#allocation5] sm:$0xff]
        %v396 = vld [vmem:[#allocation5 + $0x8] sm:$0xff]
        %v397 = vmul.f32 %v395, %v394
        %v398 = vmul.f32 %v396, %v393
        %v399 = vadd.f32 %v300, %v397
        %v400 = vadd.f32 %v301, %v398
        %401 = vrot.lane.b32.xlu0 %v384, 16
        %v402 = vpop.permute.xlu0 %401
        %403 = vrot.lane.b32.xlu0 %v385, 16
        %v404 = vpop.permute.xlu0 %403
        %vm405 = vcmp.lt.s32.totalorder %v391, 16
        %v406 = vsel %vm405, %v402, %v404
        %v407 = vsel %vm405, %v404, %v402
        %s408 = scalar_lea.vmem [#allocation5], 16
        %v409 = vld [vmem:[%s408] sm:$0xff]
        %v410 = vld [vmem:[%s408 + $0x8] sm:$0xff]
        %v411 = vmul.f32 %v409, %v407
        %v412 = vmul.f32 %v410, %v406
        %v413 = vadd.f32 %v399, %v411
        %v414 = vadd.f32 %v400, %v412
        %415 = vrot.lane.b32.xlu0 %v384, 15
        %v416 = vpop.permute.xlu0 %415
        %417 = vrot.lane.b32.xlu0 %v385, 15
        %v418 = vpop.permute.xlu0 %417
        %vm419 = vcmp.lt.s32.totalorder %v391, 15
        %v420 = vsel %vm419, %v416, %v418
        %v421 = vsel %vm419, %v418, %v416
        %s422 = scalar_lea.vmem [#allocation5], 32
        %v423 = vld [vmem:[%s422] sm:$0xff]
        %v424 = vld [vmem:[%s422 + $0x8] sm:$0xff]
        %v425 = vmul.f32 %v423, %v421
        %v426 = vmul.f32 %v424, %v420
        %v427 = vadd.f32 %v413, %v425
        %v428 = vadd.f32 %v414, %v426
        %429 = vrot.lane.b32.xlu0 %v384, 1
        %v430 = vpop.permute.xlu0 %429
        %431 = vrot.lane.b32.xlu0 %v385, 1
        %v432 = vpop.permute.xlu0 %431
        %vm433 = vcmp.lt.s32.totalorder %v391, 1
        %v434 = vsel %vm433, %v430, %v432
        %v435 = vsel %vm433, %v432, %v430
        %s436 = scalar_lea.vmem [#allocation5], 48
        %v437 = vld [vmem:[%s436] sm:$0xff]
        %v438 = vld [vmem:[%s436 + $0x8] sm:$0xff]
        %v439 = vmul.f32 %v437, %v435
        %v440 = vmul.f32 %v438, %v434
        %v441 = vadd.f32 %v427, %v439
        %v442 = vadd.f32 %v428, %v440
        %s443 = scalar_lea.vmem [#allocation5], 64
        %v444 = vld [vmem:[%s443] sm:$0xff]
        %v445 = vld [vmem:[%s443 + $0x8] sm:$0xff]
        %v446 = vmul.f32 %v444, %v384
        %v447 = vmul.f32 %v445, %v385
        %v448 = vadd.f32 %v441, %v446
        %v449 = vadd.f32 %v442, %v447
        %450 = vrot.lane.b32.xlu0 %v384, 127
        %v451 = vpop.permute.xlu0 %450
        %452 = vrot.lane.b32.xlu0 %v385, 127
        %v453 = vpop.permute.xlu0 %452
        %vm454 = vcmp.lt.s32.totalorder %v391, 127
        %v455 = vsel %vm454, %v451, %v453
        %v456 = vsel %vm454, %v453, %v451
        %s457 = scalar_lea.vmem [#allocation5], 80
        %v458 = vld [vmem:[%s457] sm:$0xff]
        %v459 = vld [vmem:[%s457 + $0x8] sm:$0xff]
        %v460 = vmul.f32 %v458, %v455
        %v461 = vmul.f32 %v459, %v456
        %v462 = vadd.f32 %v448, %v460
        %v463 = vadd.f32 %v449, %v461
        %464 = vrot.lane.b32.xlu0 %v384, 113
        %v465 = vpop.permute.xlu0 %464
        %466 = vrot.lane.b32.xlu0 %v385, 113
        %v467 = vpop.permute.xlu0 %466
        %vm468 = vcmp.lt.s32.totalorder %v391, 113
        %v469 = vsel %vm468, %v465, %v467
        %v470 = vsel %vm468, %v467, %v465
        %s471 = scalar_lea.vmem [#allocation5], 96
        %v472 = vld [vmem:[%s471] sm:$0xff]
        %v473 = vld [vmem:[%s471 + $0x8] sm:$0xff]
        %v474 = vmul.f32 %v472, %v469
        %v475 = vmul.f32 %v473, %v470
        %v476 = vadd.f32 %v462, %v474
        %v477 = vadd.f32 %v463, %v475
        %478 = vrot.lane.b32.xlu0 %v384, 112
        %v479 = vpop.permute.xlu0 %478
        %480 = vrot.lane.b32.xlu0 %v385, 112
        %v481 = vpop.permute.xlu0 %480
        %vm482 = vcmp.lt.s32.totalorder %v391, 112
        %v483 = vsel %vm482, %v479, %v481
        %v484 = vsel %vm482, %v481, %v479
        %s485 = scalar_lea.vmem [#allocation5], 112
        %v486 = vld [vmem:[%s485] sm:$0xff]
        %v487 = vld [vmem:[%s485 + $0x8] sm:$0xff]
        %v488 = vmul.f32 %v486, %v483
        %v489 = vmul.f32 %v487, %v484
        %v490 = vadd.f32 %v476, %v488
        %v491 = vadd.f32 %v477, %v489
        %492 = vrot.lane.b32.xlu0 %v384, 111
        %v493 = vpop.permute.xlu0 %492
        %494 = vrot.lane.b32.xlu0 %v385, 111
        %v495 = vpop.permute.xlu0 %494
        %vm496 = vcmp.lt.s32.totalorder %v391, 111
        %v497 = vsel %vm496, %v493, %v495
        %v498 = vsel %vm496, %v495, %v493
        %s499 = scalar_lea.vmem [#allocation5], 128
        %v500 = vld [vmem:[%s499] sm:$0xff]
        %v501 = vld [vmem:[%s499 + $0x8] sm:$0xff]
        %v502 = vmul.f32 %v500, %v497
        %v503 = vmul.f32 %v501, %v498
        %v504 = vadd.f32 %v490, %v502
        %v505 = vadd.f32 %v491, %v503
        %v506 = vld [vmem:[#allocation8] sm:$0xff]
        %v507 = vlaneseq
        %v508 = vshrl.u32 %v507, 7
        %v509 = vsub.s32 0, %v508
        %v510 = vrot.slane %v504, %v509
        %v511 = vlaneseq
        %v512 = vshrl.u32 %v511, 7
        %v513 = vsub.s32 0, %v512
        %v514 = vrot.slane %v505, %v513
        %v517 = vcombine.low %v510, %v514
        %v519 = vmul.f32 %v506, %v517
        %v520 = vadd.f32 %v305, %v519
        %v521 = vld [vmem:[#allocation10] sm:$0xff]
        %v522 = vlaneseq
        %v523 = vshrl.u32 %v522, 7
        %v524 = vsub.s32 4, %v523
        %v525 = vrot.slane %v504, %v524
        %v526 = vlaneseq
        %v527 = vshrl.u32 %v526, 7
        %v528 = vsub.s32 4, %v527
        %v529 = vrot.slane %v505, %v528
        %v532 = vcombine.low %v525, %v529
        %v534 = vmul.f32 %v521, %v532
        %v535 = vadd.f32 %v307, %v534
        %s536 = scalar_lea.vmem [#allocation8], 8
        %v537 = vld [vmem:[%s536] sm:$0xff]
        %v538 = vlaneseq
        %v539 = vshrl.u32 %v538, 7
        %v540 = vsub.s32 1, %v539
        %v541 = vrot.slane %v504, %v540
        %v542 = vlaneseq
        %v543 = vshrl.u32 %v542, 7
        %v544 = vsub.s32 1, %v543
        %v545 = vrot.slane %v505, %v544
        %v548 = vcombine.low %v541, %v545
        %v550 = vmul.f32 %v537, %v548
        %v551 = vadd.f32 %v520, %v550
        %s552 = scalar_lea.vmem [#allocation10], 8
        %v553 = vld [vmem:[%s552] sm:$0xff]
        %v554 = vlaneseq
        %v555 = vshrl.u32 %v554, 7
        %v556 = vsub.s32 5, %v555
        %v557 = vrot.slane %v504, %v556
        %v558 = vlaneseq
        %v559 = vshrl.u32 %v558, 7
        %v560 = vsub.s32 5, %v559
        %v561 = vrot.slane %v505, %v560
        %v564 = vcombine.low %v557, %v561
        %v566 = vmul.f32 %v553, %v564
        %v567 = vadd.f32 %v535, %v566
        %s568 = scalar_lea.vmem [#allocation8], 16
        %v569 = vld [vmem:[%s568] sm:$0xff]
        %v570 = vlaneseq
        %v571 = vshrl.u32 %v570, 7
        %v572 = vsub.s32 2, %v571
        %v573 = vrot.slane %v504, %v572
        %v574 = vlaneseq
        %v575 = vshrl.u32 %v574, 7
        %v576 = vsub.s32 2, %v575
        %v577 = vrot.slane %v505, %v576
        %v580 = vcombine.low %v573, %v577
        %v582 = vmul.f32 %v569, %v580
        %v583 = vadd.f32 %v551, %v582
        %s584 = scalar_lea.vmem [#allocation10], 16
        %v585 = vld [vmem:[%s584] sm:$0xff]
        %v586 = vlaneseq
        %v587 = vshrl.u32 %v586, 7
        %v588 = vsub.s32 6, %v587
        %v589 = vrot.slane %v504, %v588
        %v590 = vlaneseq
        %v591 = vshrl.u32 %v590, 7
        %v592 = vsub.s32 6, %v591
        %v593 = vrot.slane %v505, %v592
        %v596 = vcombine.low %v589, %v593
        %v598 = vmul.f32 %v585, %v596
        %v599 = vadd.f32 %v567, %v598
        %s600 = scalar_lea.vmem [#allocation8], 24
        %v601 = vld [vmem:[%s600] sm:$0xff]
        %v602 = vlaneseq
        %v603 = vshrl.u32 %v602, 7
        %v604 = vsub.s32 3, %v603
        %v605 = vrot.slane %v504, %v604
        %v606 = vlaneseq
        %v607 = vshrl.u32 %v606, 7
        %v608 = vsub.s32 3, %v607
        %v609 = vrot.slane %v505, %v608
        %v612 = vcombine.low %v605, %v609
        %v614 = vmul.f32 %v601, %v612
        %v615 = vadd.f32 %v583, %v614
        %s616 = scalar_lea.vmem [#allocation10], 24
        %v617 = vld [vmem:[%s616] sm:$0xff]
        %v618 = vlaneseq
        %v619 = vshrl.u32 %v618, 7
        %v620 = vsub.s32 7, %v619
        %v621 = vrot.slane %v504, %v620
        %v622 = vlaneseq
        %v623 = vshrl.u32 %v622, 7
        %v624 = vsub.s32 7, %v623
        %v625 = vrot.slane %v505, %v624
        %v628 = vcombine.low %v621, %v625
        %v630 = vmul.f32 %v617, %v628
        %v631 = vadd.f32 %v599, %v630
        %v632 = vxor.u32 %v615, 2147483648
        %v633 = vmul.f32 %v632, 1.442695
        %v634 = vpow.pop %v633
        %v635 = vadd.f32 %v634, 1.0
        %v636 = vrcp.pop %v635
        %v637 = vmul.f32 1.0, %v636
        %v638 = vmul.f32 %v615, %v637
        %v639 = vxor.u32 %v631, 2147483648
        %v640 = vmul.f32 %v639, 1.442695
        %v641 = vpow.pop %v640
        %v642 = vadd.f32 %v641, 1.0
        %v643 = vrcp.pop %v642
        %v644 = vmul.f32 1.0, %v643
        %v645 = vmul.f32 %v631, %v644
        %v647 = vlaneseq
        %v648 = vshrl.u32 %v647, 7
        %v649 = vsub.s32 0, %v648
        %v650 = vrot.slane %v638, %v649
        %v651 = vlaneseq
        %v652 = vshrl.u32 %v651, 7
        %v653 = vsub.s32 4, %v652
        %v654 = vrot.slane %v638, %v653
        %v658 = vlaneseq
        %v659 = vshrl.u32 %v658, 7
        %v660 = vsub.s32 0, %v659
        %v661 = vrot.slane %v645, %v660
        %v662 = vlaneseq
        %v663 = vshrl.u32 %v662, 7
        %v664 = vsub.s32 4, %v663
        %v665 = vrot.slane %v645, %v664
        %v668 = vlaneseq
        %v669 = vshrl.u32 %v668, 7
        %v670 = vsub.s32 1, %v669
        %v671 = vrot.slane %v638, %v670
        %v672 = vlaneseq
        %v673 = vshrl.u32 %v672, 7
        %v674 = vsub.s32 5, %v673
        %v675 = vrot.slane %v638, %v674
        %v678 = vlaneseq
        %v679 = vshrl.u32 %v678, 7
        %v680 = vsub.s32 1, %v679
        %v681 = vrot.slane %v645, %v680
        %v682 = vlaneseq
        %v683 = vshrl.u32 %v682, 7
        %v684 = vsub.s32 5, %v683
        %v685 = vrot.slane %v645, %v684
        %v688 = vlaneseq
        %v689 = vshrl.u32 %v688, 7
        %v690 = vsub.s32 2, %v689
        %v691 = vrot.slane %v638, %v690
        %v692 = vlaneseq
        %v693 = vshrl.u32 %v692, 7
        %v694 = vsub.s32 6, %v693
        %v695 = vrot.slane %v638, %v694
        %v698 = vlaneseq
        %v699 = vshrl.u32 %v698, 7
        %v700 = vsub.s32 2, %v699
        %v701 = vrot.slane %v645, %v700
        %v702 = vlaneseq
        %v703 = vshrl.u32 %v702, 7
        %v704 = vsub.s32 6, %v703
        %v705 = vrot.slane %v645, %v704
        %v708 = vlaneseq
        %v709 = vshrl.u32 %v708, 7
        %v710 = vsub.s32 3, %v709
        %v711 = vrot.slane %v638, %v710
        %v712 = vlaneseq
        %v713 = vshrl.u32 %v712, 7
        %v714 = vsub.s32 7, %v713
        %v715 = vrot.slane %v638, %v714
        %v718 = vlaneseq
        %v719 = vshrl.u32 %v718, 7
        %v720 = vsub.s32 3, %v719
        %v721 = vrot.slane %v645, %v720
        %v722 = vlaneseq
        %v723 = vshrl.u32 %v722, 7
        %v724 = vsub.s32 7, %v723
        %v725 = vrot.slane %v645, %v724
        %vm728 = vcmask 1040384
        %v729 = vsel %vm728, %v650, %v661
        %v730 = vsel %vm728, %v654, %v665
        %vm731 = vcmask 1041408
        %v732 = vsel %vm731, %v729, %v671
        %v733 = vsel %vm731, %v730, %v675
        %vm734 = vcmask 1042432
        %v735 = vsel %vm734, %v732, %v681
        %v736 = vsel %vm734, %v733, %v685
        %v737 = vsel %vm383, %v735, %v691
        %v738 = vsel %vm383, %v736, %v695
        %vm739 = vcmask 1044480
        %v740 = vsel %vm739, %v737, %v701
        %v741 = vsel %vm739, %v738, %v705
        %vm742 = vcmask 1045504
        %v743 = vsel %vm742, %v740, %v711
        %v744 = vsel %vm742, %v741, %v715
        %vm745 = vcmask 1046528
        %v746 = vsel %vm745, %v743, %v721
        %v747 = vsel %vm745, %v744, %v725
        %748 = vst [vmem:[%s298] sm:$0xff] %v746
        %749 = vst [vmem:[%s298 + $0x8] sm:$0xff] %v747
        %s750 = sand.u32 %s142, 1
        %s751 = scalar_lea.sflag [#allocation4], %s750
        %s752 = sand.u32 %s142, 1
        %s753 = smul.addr %s752, 16
        %s754 = scalar_lea.vmem [#allocation11], %s753
        // Predicated region
        $region61: #{tpu_custom_call.1} parent=39 // pred_check
          %p755 = pneg %p152
        $region62: #{tpu_custom_call.1} parent=39 // pred_check_branch
          %757 = sbr.rel (%p755) target = $region64
        $region63: #{tpu_custom_call.1} parent=39 // pred_region
          %s759 = ssub.s32 256, 256
          %760 = vsyncadd %s751, %s759
          %s761 = smul.addr %s24, 2
          %s762 = smul.addr %s761, 128
          %s763 = scalar_lea.hbm %s5, %s762
          %s765 = sshll.u32 %s754, 4
          %s766 = int_to_ptr.vmem [resolvable:$true] %s765
          %768 = dma.vmem_to_hbm [thread:$0]  %s766, 256, %s763, %s751
        $region64: #{tpu_custom_call.1} parent=39 // pred_fallthru
          _
      $region40: #{tpu_custom_call.1} parent=5 // pred_fallthru
        _
      %p769 = scmp.le.s32.totalorder 2, %s19
      // Predicated region
      $region65: #{tpu_custom_call.1} parent=5 // pred_check
        %p770 = pneg %p769
      $region66: #{tpu_custom_call.1} parent=5 // pred_check_branch
        %772 = sbr.rel (%p770) target = $region68
      $region67: #{tpu_custom_call.1} parent=5 // pred_region
        %s773 = ssub.s32 %s19, 2
        // Predicated region
        $region69: #{tpu_custom_call.1} parent=67 // pred_check
          %p774 = pneg %p158
        $region70: #{tpu_custom_call.1} parent=67 // pred_check_branch
          %776 = sbr.rel (%p774) target = $region72
        $region71: #{tpu_custom_call.1} parent=67 // pred_region
          %s777 = sand.u32 %s143, 1
          %s778 = scalar_lea.sflag [#allocation4], %s777
          %s779 = sand.u32 %s143, 1
          %s780 = smul.addr %s779, 16
          %s781 = scalar_lea.vmem [#allocation11], %s780
          %782 = dma.done %s778, 256
        $region72: #{tpu_custom_call.1} parent=67 // pred_fallthru
          _
      $region68: #{tpu_custom_call.1} parent=5 // pred_fallthru
        _
    $region6: #{tpu_custom_call.1} parent=1 // loop_footer
      %s23 = sadd.s32 1, %s19
    $region7: #{tpu_custom_call.1} parent=1 // loop_footer_branch
      %18 = sbr.rel target = $region3
    $region8: #{tpu_custom_call.1} parent=1 // loop_exit
      _
    %783 = vsyncpa [#allocation3], 1
    %s784 = scalar_lea.sflag [#allocation3], 1
    %785 = vsyncpa %s784, 1
    %786 = vsyncpa [#allocation6], 1
    %787 = vsyncpa [#allocation9], 1
    %788 = vsyncpa [#allocation4], 1
    %s789 = scalar_lea.sflag [#allocation4], 1
    %790 = vsyncpa %s789, 1

</llo_original>
